<compile_context>
chip_gen: v7x
topology: tpu7x:2x2x1
jax: 0.10.0
libtpu: 0.0.40
codegen_flags: <defaults>
</compile_context>

<pallas_src>
import functools

import jax
import jax.numpy as jnp
from jax import lax
from jax.experimental import pallas as pl
from jax.experimental.pallas import tpu as pltpu


def _round_up(x: int, m: int) -> int:
    return ((x + m - 1) // m) * m


def _embeddings_kernel(ids_ref, pos_ref, wtab_ref, ptab_ref, out_ref):
    # ids_ref/pos_ref: (1, TS) int32; wtab_ref: (V, H); ptab_ref: (P, H)
    # out_ref: (TS, H) float32 (lane-dense slab)
    V, _ = wtab_ref.shape
    P = ptab_ref.shape[0]
    TS = ids_ref.shape[1]

    ids = ids_ref[...]   # (1, TS) int32
    pos = pos_ref[...]   # (1, TS) int32

    # Transposed one-hot selection matrices built with 2-D iota + a cheap
    # sublane broadcast of the lane-resident id vectors:
    #   oh_w[v, t] = (v == ids[0, t])
    oh_w = (lax.broadcasted_iota(jnp.int32, (V, TS), 0)
            == jnp.broadcast_to(ids, (V, TS))).astype(wtab_ref.dtype)   # (V, TS)
    oh_p = (lax.broadcasted_iota(jnp.int32, (P, TS), 0)
            == jnp.broadcast_to(pos, (P, TS))).astype(ptab_ref.dtype)   # (P, TS)

    # word[t, h] = sum_v oh_w[v, t] * wtab[v, h]   (MXU, contract leading dim)
    word = lax.dot_general(oh_w, wtab_ref[...],
                           dimension_numbers=(((0,), (0,)), ((), ())),
                           preferred_element_type=jnp.float32)           # (TS, H)
    posemb = lax.dot_general(oh_p, ptab_ref[...],
                             dimension_numbers=(((0,), (0,)), ((), ())),
                             preferred_element_type=jnp.float32)         # (TS, H)

    # Dropout is identity in eval mode.
    out_ref[...] = (word + posemb).astype(out_ref.dtype)


@functools.partial(jax.jit, static_argnames=("token_tile",))
def edgeformer_embeddings(input_ids, word_table, pos_table,
                          position_ids=None, *, token_tile=256):
    """input_ids: [B, S] int32. Returns [B, S, H] in word_table.dtype."""
    B, S = input_ids.shape
    V, H = word_table.shape
    P, _ = pos_table.shape

    input_ids = input_ids.astype(jnp.int32)
    if position_ids is None:
        position_ids = jnp.broadcast_to(
            jnp.arange(S, dtype=jnp.int32)[None, :], (B, S))
    position_ids = position_ids.astype(jnp.int32)

    # Fuse batch and sequence into one token axis and tile it.
    # (Use 128 on v5e to match its 128x128 MXU / smaller scoped VMEM.)
    T = B * S
    ts = min(token_tile, _round_up(T, 8))   # tiny inputs: single full block
    t_pad = _round_up(T, ts)
    g = t_pad // ts

    ids_flat = jnp.pad(input_ids.reshape(T), (0, t_pad - T)).reshape(g, ts)
    pos_flat = jnp.pad(position_ids.reshape(T), (0, t_pad - T)).reshape(g, ts)

    grid_spec = pltpu.PrefetchScalarGridSpec(
        num_scalar_prefetch=0,
        grid=(g,),
        in_specs=[
            pl.BlockSpec((1, ts), lambda t: (t, 0)),       # token ids tile
            pl.BlockSpec((1, ts), lambda t: (t, 0)),       # position ids tile
            pl.BlockSpec((V, H), lambda t: (0, 0)),        # word table (fetched once)
            pl.BlockSpec((P, H), lambda t: (0, 0)),        # position table (fetched once)
        ],
        out_specs=pl.BlockSpec((ts, H), lambda t: (t, 0)),  # lane-dense output slab
    )

    flops = 2 * t_pad * (V + P) * H
    bytes_accessed = 4 * (V * H + P * H + t_pad * H) + 4 * 2 * t_pad

    out_flat = pl.pallas_call(
        _embeddings_kernel,
        out_shape=jax.ShapeDtypeStruct((t_pad, H), word_table.dtype),
        grid_spec=grid_spec,
        compiler_params=pltpu.CompilerParams(
            dimension_semantics=("parallel",),
            vmem_limit_bytes=32 * 1024 * 1024),
        cost_estimate=pl.CostEstimate(flops=flops, transcendentals=0,
                                      bytes_accessed=bytes_accessed),
    )(ids_flat, pos_flat, word_table, pos_table)

    return out_flat[:T].reshape(B, S, H)


def _reference(input_ids, word_table, pos_table, position_ids=None):
    B, S = input_ids.shape
    if position_ids is None:
        position_ids = jnp.broadcast_to(jnp.arange(S)[None, :], (B, S))
    return (jnp.take(word_table, input_ids, axis=0)
            + jnp.take(pos_table, position_ids, axis=0))


if __name__ == "__main__":
    key = jax.random.PRNGKey(0)

    # --- Small config consistent with the module (vocab=64, hidden=32, P=16) ---
    B, S, H, V, P = 2, 8, 32, 64, 16
    k_ids, k_w, k_p, key = jax.random.split(key, 4)
    input_ids = jax.random.randint(k_ids, (B, S), 0, V, dtype=jnp.int32)
    word_table = (0.02 * jax.random.normal(k_w, (V, H))).astype(jnp.float32)
    pos_table = (0.02 * jax.random.normal(k_p, (P, H))).astype(jnp.float32)

    out = edgeformer_embeddings(input_ids, word_table, pos_table)
    out = jax.block_until_ready(out)
    ref = _reference(input_ids, word_table, pos_table)
    assert out.shape == (B, S, H) and out.dtype == jnp.float32
    assert jnp.allclose(out, ref, atol=1e-6, rtol=1e-6)

    # --- Multi-tile config (exercises token fusion, padding and grid > 1) ---
    B2, S2, H2, V2, P2 = 4, 96, 128, 512, 128
    k_ids2, k_pos2, k_w2, k_p2, key = jax.random.split(key, 5)
    input_ids2 = jax.random.randint(k_ids2, (B2, S2), 0, V2, dtype=jnp.int32)
    position_ids2 = jax.random.randint(k_pos2, (B2, S2), 0, P2, dtype=jnp.int32)
    word_table2 = (0.02 * jax.random.normal(k_w2, (V2, H2))).astype(jnp.float32)
    pos_table2 = (0.02 * jax.random.normal(k_p2, (P2, H2))).astype(jnp.float32)

    out2 = edgeformer_embeddings(input_ids2, word_table2, pos_table2,
                                 position_ids2)
    out2 = jax.block_until_ready(out2)
    ref2 = _reference(input_ids2, word_table2, pos_table2, position_ids2)
    assert out2.shape == (B2, S2, H2)
    assert jnp.allclose(out2, ref2, atol=1e-6, rtol=1e-6)

    print("KERNEL_OK")
</pallas_src>

<mosaic_0001>
module attributes {stable_mosaic.version = 11 : i64} {
  func.func @_embeddings_kernel(%arg0: i32, %arg1: memref<1x16xi32, #tpu.memory_space<vmem>>, %arg2: memref<1x16xi32, #tpu.memory_space<vmem>>, %arg3: memref<64x32xf32, #tpu.memory_space<vmem>>, %arg4: memref<16x32xf32, #tpu.memory_space<vmem>>, %arg5: memref<16x32xf32, #tpu.memory_space<vmem>>) attributes {dimension_semantics = [#tpu.dimension_semantics<parallel>], iteration_bounds = array<i64: 1>, scalar_prefetch = 0 : i64, scratch_operands = 0 : i64, tpu.core_type = #tpu.core_type<tc>, window_params = [{transform_indices = @transform_0, window_bounds = array<i64: 1, 16>}, {transform_indices = @transform_1, window_bounds = array<i64: 1, 16>}, {pipeline_mode = #tpu.pipeline_mode<synchronous>, transform_indices = @transform_2, window_bounds = array<i64: 64, 32>}, {pipeline_mode = #tpu.pipeline_mode<synchronous>, transform_indices = @transform_3, window_bounds = array<i64: 16, 32>}, {transform_indices = @transform_4, window_bounds = array<i64: 16, 32>}]} {
    %c0 = arith.constant 0 : index
    %c0_0 = arith.constant 0 : index
    %0 = vector.load %arg1[%c0, %c0_0] : memref<1x16xi32, #tpu.memory_space<vmem>>, vector<1x16xi32>
    %c0_1 = arith.constant 0 : index
    %c0_2 = arith.constant 0 : index
    %1 = vector.load %arg2[%c0_1, %c0_2] : memref<1x16xi32, #tpu.memory_space<vmem>>, vector<1x16xi32>
    %2 = tpu.iota {dimensions = array<i32: 0>} : vector<64x16xi32>
    %3 = vector.shape_cast %0 : vector<1x16xi32> to vector<1x16xi32>
    %4 = vector.broadcast %3 : vector<1x16xi32> to vector<64x16xi32>
    %5 = arith.cmpi eq, %2, %4 : vector<64x16xi32>
    %6 = arith.extui %5 : vector<64x16xi1> to vector<64x16xi32>
    %7 = arith.sitofp %6 : vector<64x16xi32> to vector<64x16xf32>
    %8 = tpu.iota {dimensions = array<i32: 0>} : vector<16x16xi32>
    %9 = vector.shape_cast %1 : vector<1x16xi32> to vector<1x16xi32>
    %10 = vector.broadcast %9 : vector<1x16xi32> to vector<16x16xi32>
    %11 = arith.cmpi eq, %8, %10 : vector<16x16xi32>
    %12 = arith.extui %11 : vector<16x16xi1> to vector<16x16xi32>
    %13 = arith.sitofp %12 : vector<16x16xi32> to vector<16x16xf32>
    %c0_3 = arith.constant 0 : index
    %c0_4 = arith.constant 0 : index
    %14 = vector.load %arg3[%c0_3, %c0_4] : memref<64x32xf32, #tpu.memory_space<vmem>>, vector<64x32xf32>
    %cst = arith.constant dense<0.000000e+00> : vector<16x32xf32>
    %15 = tpu.matmul %7, %14, %cst {dimension_numbers = #tpu.dot_dimension_numbers<[0], [0], [1], [1], [0, 1, 1, 1], [], []>} : vector<64x16xf32>, vector<64x32xf32>, vector<16x32xf32> -> vector<16x32xf32>
    %c0_5 = arith.constant 0 : index
    %c0_6 = arith.constant 0 : index
    %16 = vector.load %arg4[%c0_5, %c0_6] : memref<16x32xf32, #tpu.memory_space<vmem>>, vector<16x32xf32>
    %cst_7 = arith.constant dense<0.000000e+00> : vector<16x32xf32>
    %17 = tpu.matmul %13, %16, %cst_7 {dimension_numbers = #tpu.dot_dimension_numbers<[0], [0], [1], [1], [0, 1, 1, 1], [], []>} : vector<16x16xf32>, vector<16x32xf32>, vector<16x32xf32> -> vector<16x32xf32>
    %18 = arith.addf %15, %17 : vector<16x32xf32>
    %c0_8 = arith.constant 0 : index
    %c0_9 = arith.constant 0 : index
    %19 = vector.load %arg5[%c0_8, %c0_9] : memref<16x32xf32, #tpu.memory_space<vmem>>, vector<16x32xf32>
    tpu.vector_store %arg5[%c0_8, %c0_9], %18 {strides = array<i32>} : memref<16x32xf32, #tpu.memory_space<vmem>>, vector<16x32xf32>,
    return
  }
  func.func @transform_0(%arg0: i32) -> (i32, i32) {
    %c0_i32 = arith.constant 0 : i32
    %c0_i32_0 = arith.constant 0 : i32
    return %arg0, %c0_i32 : i32, i32
  }
  func.func @transform_1(%arg0: i32) -> (i32, i32) {
    %c0_i32 = arith.constant 0 : i32
    %c0_i32_0 = arith.constant 0 : i32
    return %arg0, %c0_i32 : i32, i32
  }
  func.func @transform_2(%arg0: i32) -> (i32, i32) {
    %c0_i32 = arith.constant 0 : i32
    %c0_i32_0 = arith.constant 0 : i32
    %c0_i32_1 = arith.constant 0 : i32
    return %c0_i32, %c0_i32_0 : i32, i32
  }
  func.func @transform_3(%arg0: i32) -> (i32, i32) {
    %c0_i32 = arith.constant 0 : i32
    %c0_i32_0 = arith.constant 0 : i32
    %c0_i32_1 = arith.constant 0 : i32
    return %c0_i32, %c0_i32_0 : i32, i32
  }
  func.func @transform_4(%arg0: i32) -> (i32, i32) {
    %c0_i32 = arith.constant 0 : i32
    %c0_i32_0 = arith.constant 0 : i32
    return %arg0, %c0_i32 : i32, i32
  }
}

</mosaic_0001>

<llo_original>
// kernel: edgeformer_embeddings.1
$region0: #{edgeformer_embeddings.1}
  #allocation0 [shape = 'u32[]', space=smem, size = 0x4, offset = 0x4, fixed_abs, tag = 'smem constant byte address 0x4 - core index']
  #allocation1 [shape = 'u32[144,128]{1,0:T(1,128)}', space=vmem, size = 0x12000, scoped, tag = 'internal scratch']
  %s0 = inlined_call_operand.vmem [shape: s32[1,16], index: 0, kind: input, shape index: {}]
  %s1 = inlined_call_operand.vmem [shape: s32[1,16], index: 1, kind: input, shape index: {}]
  %s2 = inlined_call_operand.vmem [shape: f32[64,32], index: 2, kind: input, shape index: {}]
  %s3 = inlined_call_operand.vmem [shape: f32[16,32], index: 3, kind: input, shape index: {}]
  %s4 = inlined_call_operand.hbm [shape: f32[16,32], index: 4, kind: output, shape index: {}]
  %s5 = sld [smem:[#allocation0]]
  $region26: #{edgeformer_embeddings.1} parent=0
    _
  %s7 = ssub.s32 1, %s5
  %s8 = scalar_select 0, %s7, %s5
  $region1: #{edgeformer_embeddings.1} parent=0
    #allocation2 [shape = 'u8[8192]{0}', space=vmem, size = 0x2000, scoped, tag = 'output window, operand 0, single buffered']
    #allocation3 [shape = 's32[1]{0}', space=sflag, size = 0x4, scoped, tag = 'scoped memory for edgeformer_embeddings.1']
    %9 = vsyncpa [#allocation3], 0
    // Predicated region
    $region2: #{edgeformer_embeddings.1} parent=1 // pred_check
      _
    $region3: #{edgeformer_embeddings.1} parent=1 // pred_check_branch
      %11 = sbr.rel (0) target = $region5
    $region4: #{edgeformer_embeddings.1} parent=1 // pred_region
      _
    $region5: #{edgeformer_embeddings.1} parent=1 // pred_fallthru
      _
    // Predicated region
    $region6: #{edgeformer_embeddings.1} parent=1 // pred_check
      _
    $region7: #{edgeformer_embeddings.1} parent=1 // pred_check_branch
      %13 = sbr.rel (0) target = $region9
    $region8: #{edgeformer_embeddings.1} parent=1 // pred_region
      _
    $region9: #{edgeformer_embeddings.1} parent=1 // pred_fallthru
      _
    // Predicated region
    $region10: #{edgeformer_embeddings.1} parent=1 // pred_check
      _
    $region11: #{edgeformer_embeddings.1} parent=1 // pred_check_branch
      %15 = sbr.rel (0) target = $region13
    $region12: #{edgeformer_embeddings.1} parent=1 // pred_region
      _
    $region13: #{edgeformer_embeddings.1} parent=1 // pred_fallthru
      _
    // Predicated region
    $region14: #{edgeformer_embeddings.1} parent=1 // pred_check
      _
    $region15: #{edgeformer_embeddings.1} parent=1 // pred_check_branch
      %17 = sbr.rel (0) target = $region17
    $region16: #{edgeformer_embeddings.1} parent=1 // pred_region
      _
    $region17: #{edgeformer_embeddings.1} parent=1 // pred_fallthru
      _
    %v18 = vld [vmem:[%s0] sm:$0x1]
    %v19 = vld [vmem:[%s1] sm:$0x1]
    %v20 = vlaneseq
    %v21 = vshrl.u32 %v20, 7
    %v22 = vadd.s32 %v21, 8
    %v23 = vadd.s32 %v21, 16
    %v24 = vadd.s32 %v21, 24
    %v25 = vadd.s32 %v21, 32
    %v26 = vadd.s32 %v21, 40
    %v27 = vadd.s32 %v21, 48
    %v28 = vadd.s32 %v21, 56
    %v29 = vlaneseq
    %v30 = vshrl.u32 %v29, 7
    %v31 = vsub.s32 0, %v30
    %v32 = vrot.slane %v18, %v31
    %vm33 = vcmp.eq.s32.totalorder %v21, %v32
    %vm34 = vcmp.eq.s32.totalorder %v22, %v32
    %vm35 = vcmp.eq.s32.totalorder %v23, %v32
    %vm36 = vcmp.eq.s32.totalorder %v24, %v32
    %vm37 = vcmp.eq.s32.totalorder %v25, %v32
    %vm38 = vcmp.eq.s32.totalorder %v26, %v32
    %vm39 = vcmp.eq.s32.totalorder %v27, %v32
    %vm40 = vcmp.eq.s32.totalorder %v28, %v32
    %v41 = vsel %vm33, 1, 0
    %v42 = vsel %vm34, 1, 0
    %v43 = vsel %vm35, 1, 0
    %v44 = vsel %vm36, 1, 0
    %v45 = vsel %vm37, 1, 0
    %v46 = vsel %vm38, 1, 0
    %v47 = vsel %vm39, 1, 0
    %v48 = vsel %vm40, 1, 0
    %v49 = vcvt.s32.f32 %v41
    %v50 = vcvt.s32.f32 %v42
    %v51 = vcvt.s32.f32 %v43
    %v52 = vcvt.s32.f32 %v44
    %v53 = vcvt.s32.f32 %v45
    %v54 = vcvt.s32.f32 %v46
    %v55 = vcvt.s32.f32 %v47
    %v56 = vcvt.s32.f32 %v48
    %v57 = vlaneseq
    %v58 = vshrl.u32 %v57, 7
    %v59 = vsub.s32 0, %v58
    %v60 = vrot.slane %v19, %v59
    %vm61 = vcmp.eq.s32.totalorder %v21, %v60
    %vm62 = vcmp.eq.s32.totalorder %v22, %v60
    %v63 = vsel %vm61, 1, 0
    %v64 = vsel %vm62, 1, 0
    %v65 = vcvt.s32.f32 %v63
    %v66 = vcvt.s32.f32 %v64
    %v67 = vld [vmem:[%s2] sm:$0xff]
    %v68 = vld [vmem:[%s2 + $0x8] sm:$0xff]
    %v69 = vld [vmem:[%s2 + $0x10] sm:$0xff]
    %v70 = vld [vmem:[%s2 + $0x18] sm:$0xff]
    %v71 = vld [vmem:[%s2 + $0x20] sm:$0xff]
    %v72 = vld [vmem:[%s2 + $0x28] sm:$0xff]
    %v73 = vld [vmem:[%s2 + $0x30] sm:$0xff]
    %v74 = vld [vmem:[%s2 + $0x38] sm:$0xff]
    %v75 = vld [vmem:[%s3] sm:$0xff]
    %v76 = vld [vmem:[%s3 + $0x8] sm:$0xff]
    %77 = vxpose.xlu0.b32.start [1/16] %v65, 128
    %78 = vxpose.xlu0.b32.cont [2/16] %v66, 128
    %79 = vxpose.xlu0.b32.cont [3/16] 0.0, 128
    %80 = vxpose.xlu0.b32.cont [4/16] 0.0, 128
    %81 = vxpose.xlu0.b32.cont [5/16] 0.0, 128
    %82 = vxpose.xlu0.b32.cont [6/16] 0.0, 128
    %83 = vxpose.xlu0.b32.cont [7/16] 0.0, 128
    %84 = vxpose.xlu0.b32.cont [8/16] 0.0, 128
    %85 = vxpose.xlu0.b32.cont [9/16] 0.0, 128
    %86 = vxpose.xlu0.b32.cont [10/16] 0.0, 128
    %87 = vxpose.xlu0.b32.cont [11/16] 0.0, 128
    %88 = vxpose.xlu0.b32.cont [12/16] 0.0, 128
    %89 = vxpose.xlu0.b32.cont [13/16] 0.0, 128
    %90 = vxpose.xlu0.b32.cont [14/16] 0.0, 128
    %91 = vxpose.xlu0.b32.cont [15/16] 0.0, 128
    %92 = vxpose.xlu0.b32.end [16/16] 0.0, 128
    %v93 = vpop.trf.xlu0
    %v94 = vpop.trf.xlu0
    %v95 = vpop.trf.xlu0
    %v96 = vpop.trf.xlu0
    %v97 = vpop.trf.xlu0
    %v98 = vpop.trf.xlu0
    %v99 = vpop.trf.xlu0
    %v100 = vpop.trf.xlu0
    %v101 = vpop.trf.xlu0
    %v102 = vpop.trf.xlu0
    %v103 = vpop.trf.xlu0
    %v104 = vpop.trf.xlu0
    %v105 = vpop.trf.xlu0
    %v106 = vpop.trf.xlu0
    %v107 = vpop.trf.xlu0
    %v108 = vpop.trf.xlu0
    %vm109 = vcmask 130048
    %v111 = vsel %vm109, %v93, 0
    %v114 = vsel %vm109, %v94, 0
    %116 = vmatprep.subr.mxu0 0.0
    %117 = vmatpush1.msra.mxu0 %v75
    %118 = vmatprep.subr.mxu0 0.0
    %119 = vmatpush1.msra.mxu0 %v76
    %120 = vmatprep.subr.mxu0 0.0
    %121 = vmatpush1.msra.mxu0 0.0
    %122 = vmatprep.subr.mxu0 0.0
    %123 = vmatpush1.msra.mxu0 0.0
    %124 = vmatprep.subr.mxu0 0.0
    %125 = vmatpush1.msra.mxu0 0.0
    %126 = vmatprep.subr.mxu0 0.0
    %127 = vmatpush1.msra.mxu0 0.0
    %128 = vmatprep.subr.mxu0 0.0
    %129 = vmatpush1.msra.mxu0 0.0
    %130 = vmatprep.subr.mxu0 0.0
    %131 = vmatpush1.msra.mxu0 0.0
    %132 = vmatprep.subr.mxu0 0.0
    %133 = vmatpush1.msra.mxu0 0.0
    %134 = vmatprep.subr.mxu0 0.0
    %135 = vmatpush1.msra.mxu0 0.0
    %136 = vmatprep.subr.mxu0 0.0
    %137 = vmatpush1.msra.mxu0 0.0
    %138 = vmatprep.subr.mxu0 0.0
    %139 = vmatpush1.msra.mxu0 0.0
    %140 = vmatprep.subr.mxu0 0.0
    %141 = vmatpush1.msra.mxu0 0.0
    %142 = vmatprep.subr.mxu0 0.0
    %143 = vmatpush1.msra.mxu0 0.0
    %144 = vmatprep.subr.mxu0 0.0
    %145 = vmatpush1.msra.mxu0 0.0
    %146 = vmatprep.subr.mxu0 0.0
    %147 = vmatpush1.msra.mxu0 0.0
    %148 = vmatprep.subr.mxu0 0.0
    %149 = vmatpush1.msra.mxu0 0.0
    %150 = vmatprep.subr.mxu0 0.0
    %151 = vmatpush1.msra.mxu0 0.0
    %152 = vmatprep.subr.mxu0 0.0
    %153 = vmatpush1.msra.mxu0 0.0
    %154 = vmatprep.subr.mxu0 0.0
    %155 = vmatpush1.msra.mxu0 0.0
    %156 = vmatprep.subr.mxu0 0.0
    %157 = vmatpush1.msra.mxu0 0.0
    %158 = vmatprep.subr.mxu0 0.0
    %159 = vmatpush1.msra.mxu0 0.0
    %160 = vmatprep.subr.mxu0 0.0
    %161 = vmatpush1.msra.mxu0 0.0
    %162 = vmatprep.subr.mxu0 0.0
    %163 = vmatpush1.msra.mxu0 0.0
    %164 = vmatprep.subr.mxu0 0.0
    %165 = vmatpush1.msra.mxu0 0.0
    %166 = vmatprep.subr.mxu0 0.0
    %167 = vmatpush1.msra.mxu0 0.0
    %168 = vmatprep.subr.mxu0 0.0
    %169 = vmatpush1.msra.mxu0 0.0
    %170 = vmatprep.subr.mxu0 0.0
    %171 = vmatpush1.msra.mxu0 0.0
    %172 = vmatprep.subr.mxu0 0.0
    %173 = vmatpush1.msra.mxu0 0.0
    %174 = vmatprep.subr.mxu0 0.0
    %175 = vmatpush1.msra.mxu0 0.0
    %176 = vmatprep.subr.mxu0 0.0
    %177 = vmatpush1.msra.mxu0 0.0
    %178 = vmatprep.subr.mxu0 0.0
    %179 = vmatpush1.msra.mxu0 0.0
    %180 = vmatprep.mubr.f32.mxu0 0.0
    %181 = vmatmul.mubr.f32.gmra.mrb[0].mxu0 %v111
    %v182 = vpop.f32.mrb[0].mxu0
    %v183 = vadd.f32 0.0, %v182
    %v184 = vpop.f32.mrb[0].mxu0
    %185 = vmatprep.mubr.f32.mxu0 0.0
    %186 = vmatmul.mubr.f32.gmra.mrb[0].mxu0 %v114
    %v187 = vpop.f32.mrb[0].mxu0
    %v188 = vadd.f32 0.0, %v187
    %v189 = vpop.f32.mrb[0].mxu0
    %190 = vdwg.mxu0
    %191 = vxpose.xlu0.b32.start [1/16] %v49, 128
    %192 = vxpose.xlu0.b32.cont [2/16] %v50, 128
    %193 = vxpose.xlu0.b32.cont [3/16] %v51, 128
    %194 = vxpose.xlu0.b32.cont [4/16] %v52, 128
    %195 = vxpose.xlu0.b32.cont [5/16] %v53, 128
    %196 = vxpose.xlu0.b32.cont [6/16] %v54, 128
    %197 = vxpose.xlu0.b32.cont [7/16] %v55, 128
    %198 = vxpose.xlu0.b32.cont [8/16] %v56, 128
    %199 = vxpose.xlu0.b32.cont [9/16] 0.0, 128
    %200 = vxpose.xlu0.b32.cont [10/16] 0.0, 128
    %201 = vxpose.xlu0.b32.cont [11/16] 0.0, 128
    %202 = vxpose.xlu0.b32.cont [12/16] 0.0, 128
    %203 = vxpose.xlu0.b32.cont [13/16] 0.0, 128
    %204 = vxpose.xlu0.b32.cont [14/16] 0.0, 128
    %205 = vxpose.xlu0.b32.cont [15/16] 0.0, 128
    %206 = vxpose.xlu0.b32.end [16/16] 0.0, 128
    %v207 = vpop.trf.xlu0
    %v208 = vpop.trf.xlu0
    %v209 = vpop.trf.xlu0
    %v210 = vpop.trf.xlu0
    %v211 = vpop.trf.xlu0
    %v212 = vpop.trf.xlu0
    %v213 = vpop.trf.xlu0
    %v214 = vpop.trf.xlu0
    %v215 = vpop.trf.xlu0
    %v216 = vpop.trf.xlu0
    %v217 = vpop.trf.xlu0
    %v218 = vpop.trf.xlu0
    %v219 = vpop.trf.xlu0
    %v220 = vpop.trf.xlu0
    %v221 = vpop.trf.xlu0
    %v222 = vpop.trf.xlu0
    %vm223 = vcmask 523264
    %v225 = vsel %vm223, %v207, 0
    %v228 = vsel %vm223, %v208, 0
    %230 = vmatprep.subr.mxu0 0.0
    %231 = vmatpush1.msra.mxu0 %v67
    %232 = vmatprep.subr.mxu0 0.0
    %233 = vmatpush1.msra.mxu0 %v68
    %234 = vmatprep.subr.mxu0 0.0
    %235 = vmatpush1.msra.mxu0 %v69
    %236 = vmatprep.subr.mxu0 0.0
    %237 = vmatpush1.msra.mxu0 %v70
    %238 = vmatprep.subr.mxu0 0.0
    %239 = vmatpush1.msra.mxu0 %v71
    %240 = vmatprep.subr.mxu0 0.0
    %241 = vmatpush1.msra.mxu0 %v72
    %242 = vmatprep.subr.mxu0 0.0
    %243 = vmatpush1.msra.mxu0 %v73
    %244 = vmatprep.subr.mxu0 0.0
    %245 = vmatpush1.msra.mxu0 %v74
    %246 = vmatprep.subr.mxu0 0.0
    %247 = vmatpush1.msra.mxu0 0.0
    %248 = vmatprep.subr.mxu0 0.0
    %249 = vmatpush1.msra.mxu0 0.0
    %250 = vmatprep.subr.mxu0 0.0
    %251 = vmatpush1.msra.mxu0 0.0
    %252 = vmatprep.subr.mxu0 0.0
    %253 = vmatpush1.msra.mxu0 0.0
    %254 = vmatprep.subr.mxu0 0.0
    %255 = vmatpush1.msra.mxu0 0.0
    %256 = vmatprep.subr.mxu0 0.0
    %257 = vmatpush1.msra.mxu0 0.0
    %258 = vmatprep.subr.mxu0 0.0
    %259 = vmatpush1.msra.mxu0 0.0
    %260 = vmatprep.subr.mxu0 0.0
    %261 = vmatpush1.msra.mxu0 0.0
    %262 = vmatprep.subr.mxu0 0.0
    %263 = vmatpush1.msra.mxu0 0.0
    %264 = vmatprep.subr.mxu0 0.0
    %265 = vmatpush1.msra.mxu0 0.0
    %266 = vmatprep.subr.mxu0 0.0
    %267 = vmatpush1.msra.mxu0 0.0
    %268 = vmatprep.subr.mxu0 0.0
    %269 = vmatpush1.msra.mxu0 0.0
    %270 = vmatprep.subr.mxu0 0.0
    %271 = vmatpush1.msra.mxu0 0.0
    %272 = vmatprep.subr.mxu0 0.0
    %273 = vmatpush1.msra.mxu0 0.0
    %274 = vmatprep.subr.mxu0 0.0
    %275 = vmatpush1.msra.mxu0 0.0
    %276 = vmatprep.subr.mxu0 0.0
    %277 = vmatpush1.msra.mxu0 0.0
    %278 = vmatprep.subr.mxu0 0.0
    %279 = vmatpush1.msra.mxu0 0.0
    %280 = vmatprep.subr.mxu0 0.0
    %281 = vmatpush1.msra.mxu0 0.0
    %282 = vmatprep.subr.mxu0 0.0
    %283 = vmatpush1.msra.mxu0 0.0
    %284 = vmatprep.subr.mxu0 0.0
    %285 = vmatpush1.msra.mxu0 0.0
    %286 = vmatprep.subr.mxu0 0.0
    %287 = vmatpush1.msra.mxu0 0.0
    %288 = vmatprep.subr.mxu0 0.0
    %289 = vmatpush1.msra.mxu0 0.0
    %290 = vmatprep.subr.mxu0 0.0
    %291 = vmatpush1.msra.mxu0 0.0
    %292 = vmatprep.subr.mxu0 0.0
    %293 = vmatpush1.msra.mxu0 0.0
    %294 = vmatprep.mubr.f32.mxu0 0.0
    %295 = vmatmul.mubr.f32.gmra.mrb[0].mxu0 %v225
    %v296 = vpop.f32.mrb[0].mxu0
    %v297 = vadd.f32 %v183, %v296
    %v298 = vpop.f32.mrb[0].mxu0
    %299 = vmatprep.mubr.f32.mxu0 0.0
    %300 = vmatmul.mubr.f32.gmra.mrb[0].mxu0 %v228
    %v301 = vpop.f32.mrb[0].mxu0
    %v302 = vadd.f32 %v188, %v301
    %v303 = vpop.f32.mrb[0].mxu0
    %304 = vdwg.mxu0
    %vm305 = vcmask 261120
    %306 = vst.msk [vmem:[#allocation2] sm:$0xff] %vm305, %v297
    %307 = vst.msk [vmem:[#allocation2 + $0x8] sm:$0xff] %vm305, %v302
    // Predicated region
    $region18: #{edgeformer_embeddings.1} parent=1 // pred_check
      _
    $region19: #{edgeformer_embeddings.1} parent=1 // pred_check_branch
      %309 = sbr.rel (0) target = $region21
    $region20: #{edgeformer_embeddings.1} parent=1 // pred_region
      %s311 = ssub.s32 256, 256
      %312 = vsyncadd [#allocation3], %s311
      %s313 = sshll.u32 [#allocation2], 4
      %s314 = int_to_ptr.vmem [resolvable:$true] %s313
      %319 = dma.vmem_to_hbm [thread:$0]  %s314, 256, %s4, [#allocation3], 128, 128, 8
    $region21: #{edgeformer_embeddings.1} parent=1 // pred_fallthru
      _
    // Predicated region
    $region22: #{edgeformer_embeddings.1} parent=1 // pred_check
      _
    $region23: #{edgeformer_embeddings.1} parent=1 // pred_check_branch
      %321 = sbr.rel (0) target = $region25
    $region24: #{edgeformer_embeddings.1} parent=1 // pred_region
      %322 = dma.done [#allocation3], 256
    $region25: #{edgeformer_embeddings.1} parent=1 // pred_fallthru
      _
    %323 = vsyncpa [#allocation3], 1

</llo_original>
